<compile_context>
chip_gen: v6e
topology: v6e:2x2x1
jax: 0.10.0
libtpu: 0.0.40
codegen_flags: <defaults>
</compile_context>

<pallas_src>
import functools

import jax
import jax.numpy as jnp
from jax.experimental import pallas as pl
from jax.experimental.pallas import tpu as pltpu

_SMILES_CHARS = [' ', '#', '%', '(', ')', '+', '-', '.', '/', '0', '1', '2',
                 '3', '4', '5', '6', '7', '8', '9', '=', '@', 'A', 'B', 'C',
                 'F', 'H', 'I', 'K', 'L', 'M', 'N', 'O', 'P', 'R', 'S', 'T',
                 'V', 'X', 'Z', '[', '\\', ']', 'a', 'b', 'c', 'e', 'g', 'i',
                 'l', 'n', 'o', 'p', 'r', 's', 't', 'u']
VOCAB_SIZE = len(_SMILES_CHARS)  # 56


def _round_up(x, m):
    return ((x + m - 1) // m) * m


def _embedding_kernel(idx_ref, table_ref, out_ref, *, vocab_size):
    # idx_ref:   [R, P]       int32, P tokens packed per output row
    # table_ref: [P*Vp, P*D]  block-diagonal packed embedding table
    # out_ref:   [R, P*D]     lane-dense output (P*D == 128 when 128 % D == 0)
    r, p = idx_ref.shape
    k, _ = table_ref.shape
    vp = k // p

    idx = idx_ref[...]
    valid = (idx >= 0) & (idx < vocab_size)
    base = jax.lax.broadcasted_iota(jnp.int32, (r, p), 1) * vp
    # Invalid / padding tokens -> sentinel k, which matches no lane -> zero row.
    shifted = jnp.where(valid, idx + base, k)

    lane = jax.lax.broadcasted_iota(jnp.int32, (r, k), 1)
    hit = lane == shifted[:, 0:1]
    for j in range(1, p):  # static unroll; P <= 4 here
        hit = jnp.logical_or(hit, lane == shifted[:, j:j + 1])
    one_hot = hit.astype(table_ref.dtype)

    # One-hot x block-diagonal table on the MXU: exact gather of P tokens/row.
    out_ref[...] = jnp.dot(
        one_hot, table_ref[...], preferred_element_type=jnp.float32
    ).astype(out_ref.dtype)


def smiles_embedding(x, weight, *, row_tile=256):
    """x: [B, S] int token ids; weight: [V, D] float -> [B, S, D] (== weight[x])."""
    b, s = x.shape
    v, d = weight.shape

    # Pack P tokens per 128-lane output row when D divides 128.
    if d <= 128 and 128 % d == 0:
        p = 128 // d
    else:
        p = 1  # TODO(synk): lane-dense packing only implemented when D divides 128.
    l = p * d
    vp = _round_up(v, 8)
    k = p * vp

    n = b * s
    r_total = pl.cdiv(n, p)                           # packed output rows needed
    r_tile = min(row_tile, _round_up(r_total, 8))     # rows (P tokens each) per step
    r_pad = _round_up(r_total, r_tile)
    n_pad = r_pad * p

    # Dense packed index array [R_pad, P]; padding tokens use an invalid id.
    idx = jnp.full((n_pad,), v, dtype=jnp.int32).at[:n].set(
        x.reshape(n).astype(jnp.int32))
    idx = idx.reshape(r_pad, p)

    # Block-diagonal packed table [P*Vp, P*D]; tiny (<=128 KiB), built per call.
    wpad = jnp.zeros((vp, d), weight.dtype).at[:v, :].set(weight)
    table = jnp.zeros((k, l), weight.dtype)
    for j in range(p):
        table = table.at[j * vp:(j + 1) * vp, j * d:(j + 1) * d].set(wpad)

    out = pl.pallas_call(
        functools.partial(_embedding_kernel, vocab_size=v),
        out_shape=jax.ShapeDtypeStruct((r_pad, l), weight.dtype),
        grid=(r_pad // r_tile,),
        in_specs=[
            pl.BlockSpec((r_tile, p), lambda i: (i, 0)),  # packed token ids
            pl.BlockSpec((k, l), lambda i: (0, 0)),       # table: resident, DMA'd once
        ],
        out_specs=pl.BlockSpec((r_tile, l), lambda i: (i, 0)),
        compiler_params=pltpu.CompilerParams(
            dimension_semantics=("parallel",)),
    )(idx, table)

    # (R_pad, P*D) row-major == (R_pad*P, D) row-major; drop padding, restore [B,S,D].
    return out.reshape(r_pad * p, d)[:n].reshape(b, s, d)


if __name__ == "__main__":
    embedding_dim = 32
    batch, seq = 2, 8

    key = jax.random.PRNGKey(0)
    k_w, k_x = jax.random.split(key)

    # nn.Embedding default init: weight ~ N(0, 1), shape [num_embeddings, embedding_dim]
    weight = jax.random.normal(k_w, (VOCAB_SIZE, embedding_dim), dtype=jnp.float32)
    x = jax.random.randint(k_x, (batch, seq), minval=0, maxval=VOCAB_SIZE,
                           dtype=jnp.int32)

    out = jax.block_until_ready(smiles_embedding(x, weight))

    # Reference: plain JAX gather (== torch.nn.Embedding forward).
    ref = weight[x]
    assert out.shape == (batch, seq, embedding_dim)
    assert jnp.allclose(out, ref, atol=1e-6), "mismatch vs reference gather"

    print("KERNEL_OK")
</pallas_src>

<mosaic_0001>
module attributes {stable_mosaic.version = 11 : i64} {
  func.func @_embedding_kernel(%arg0: i32, %arg1: memref<8x4xi32, #tpu.memory_space<vmem>>, %arg2: memref<224x128xf32, #tpu.memory_space<vmem>>, %arg3: memref<8x128xf32, #tpu.memory_space<vmem>>) attributes {dimension_semantics = [#tpu.dimension_semantics<parallel>], iteration_bounds = array<i64: 1>, scalar_prefetch = 0 : i64, scratch_operands = 0 : i64, tpu.core_type = #tpu.core_type<tc>, window_params = [{transform_indices = @transform_0, window_bounds = array<i64: 8, 4>}, {pipeline_mode = #tpu.pipeline_mode<synchronous>, transform_indices = @transform_1, window_bounds = array<i64: 224, 128>}, {transform_indices = @transform_2, window_bounds = array<i64: 8, 128>}]} {
    %c0 = arith.constant 0 : index
    %c0_0 = arith.constant 0 : index
    %0 = vector.load %arg1[%c0, %c0_0] : memref<8x4xi32, #tpu.memory_space<vmem>>, vector<8x4xi32>
    %c0_i32 = arith.constant 0 : i32
    %1 = vector.broadcast %c0_i32 : i32 to vector<8x4xi32>
    %2 = arith.cmpi sge, %0, %1 : vector<8x4xi32>
    %c56_i32 = arith.constant 56 : i32
    %3 = vector.broadcast %c56_i32 : i32 to vector<8x4xi32>
    %4 = arith.cmpi slt, %0, %3 : vector<8x4xi32>
    %5 = arith.andi %2, %4 : vector<8x4xi1>
    %6 = tpu.iota {dimensions = array<i32: 1>} : vector<8x4xi32>
    %c56_i32_1 = arith.constant 56 : i32
    %7 = vector.broadcast %c56_i32_1 : i32 to vector<8x4xi32>
    %8 = arith.muli %6, %7 : vector<8x4xi32>
    %9 = arith.addi %0, %8 : vector<8x4xi32>
    %c224_i32 = arith.constant 224 : i32
    %10 = vector.broadcast %c224_i32 : i32 to vector<8x4xi32>
    %11 = arith.select %5, %9, %10 : vector<8x4xi1>, vector<8x4xi32>
    %12 = tpu.iota {dimensions = array<i32: 1>} : vector<8x224xi32>
    %13 = vector.extract_strided_slice %11 {offsets = [0, 0], sizes = [8, 1], strides = [1, 1]} : vector<8x4xi32> to vector<8x1xi32>
    %14 = vector.broadcast %13 : vector<8x1xi32> to vector<8x224xi32>
    %15 = arith.cmpi eq, %12, %14 : vector<8x224xi32>
    %16 = vector.extract_strided_slice %11 {offsets = [0, 1], sizes = [8, 1], strides = [1, 1]} : vector<8x4xi32> to vector<8x1xi32>
    %17 = vector.broadcast %16 : vector<8x1xi32> to vector<8x224xi32>
    %18 = arith.cmpi eq, %12, %17 : vector<8x224xi32>
    %19 = arith.ori %15, %18 : vector<8x224xi1>
    %20 = vector.extract_strided_slice %11 {offsets = [0, 2], sizes = [8, 1], strides = [1, 1]} : vector<8x4xi32> to vector<8x1xi32>
    %21 = vector.broadcast %20 : vector<8x1xi32> to vector<8x224xi32>
    %22 = arith.cmpi eq, %12, %21 : vector<8x224xi32>
    %23 = arith.ori %19, %22 : vector<8x224xi1>
    %24 = vector.extract_strided_slice %11 {offsets = [0, 3], sizes = [8, 1], strides = [1, 1]} : vector<8x4xi32> to vector<8x1xi32>
    %25 = vector.broadcast %24 : vector<8x1xi32> to vector<8x224xi32>
    %26 = arith.cmpi eq, %12, %25 : vector<8x224xi32>
    %27 = arith.ori %23, %26 : vector<8x224xi1>
    %28 = arith.extui %27 : vector<8x224xi1> to vector<8x224xi32>
    %29 = arith.sitofp %28 : vector<8x224xi32> to vector<8x224xf32>
    %c0_2 = arith.constant 0 : index
    %c0_3 = arith.constant 0 : index
    %30 = vector.load %arg2[%c0_2, %c0_3] : memref<224x128xf32, #tpu.memory_space<vmem>>, vector<224x128xf32>
    %cst = arith.constant dense<0.000000e+00> : vector<8x128xf32>
    %31 = tpu.matmul %29, %30, %cst {dimension_numbers = #tpu.dot_dimension_numbers<[1], [0], [0], [1], [0, 0, 1, 1], [], []>} : vector<8x224xf32>, vector<224x128xf32>, vector<8x128xf32> -> vector<8x128xf32>
    %c0_4 = arith.constant 0 : index
    %c0_5 = arith.constant 0 : index
    %32 = vector.load %arg3[%c0_4, %c0_5] : memref<8x128xf32, #tpu.memory_space<vmem>>, vector<8x128xf32>
    tpu.vector_store %arg3[%c0_4, %c0_5], %31 {strides = array<i32>} : memref<8x128xf32, #tpu.memory_space<vmem>>, vector<8x128xf32>,
    return
  }
  func.func @transform_0(%arg0: i32) -> (i32, i32) {
    %c0_i32 = arith.constant 0 : i32
    %c0_i32_0 = arith.constant 0 : i32
    return %arg0, %c0_i32 : i32, i32
  }
  func.func @transform_1(%arg0: i32) -> (i32, i32) {
    %c0_i32 = arith.constant 0 : i32
    %c0_i32_0 = arith.constant 0 : i32
    %c0_i32_1 = arith.constant 0 : i32
    return %c0_i32, %c0_i32_0 : i32, i32
  }
  func.func @transform_2(%arg0: i32) -> (i32, i32) {
    %c0_i32 = arith.constant 0 : i32
    %c0_i32_0 = arith.constant 0 : i32
    return %arg0, %c0_i32 : i32, i32
  }
}

</mosaic_0001>

<llo_original>
// kernel: tpu_custom_call.1
$region0: #{tpu_custom_call.1}
  #allocation0 [shape = 'u32[]', space=smem, size = 0x4, offset = 0x4, fixed_abs, tag = 'smem constant byte address 0x4 - core index']
  #allocation1 [shape = 'u32[144,128]{1,0:T(1,128)}', space=vmem, size = 0x12000, scoped, tag = 'internal scratch']
  %s0 = inlined_call_operand.vmem [shape: s32[8,4], index: 0, kind: input, shape index: {}]
  %s1 = inlined_call_operand.hbm [shape: f32[224,128], index: 1, kind: input, shape index: {}]
  %s2 = inlined_call_operand.hbm [shape: f32[8,128], index: 2, kind: output, shape index: {}]
  %s3 = sld [smem:[#allocation0]]
  $region22: #{tpu_custom_call.1} parent=0
    _
  %s5 = ssub.s32 1, %s3
  %s6 = scalar_select 0, %s5, %s3
  $region1: #{tpu_custom_call.1} parent=0
    #allocation2 [shape = 'u8[114688]{0}', space=vmem, size = 0x1c000, scoped, tag = 'input window, operand 1, single buffered']
    #allocation3 [shape = 's32[1]{0}', space=sflag, size = 0x4, scoped, tag = 'scoped memory for tpu_custom_call.1']
    #allocation4 [shape = 's32[1]{0}', space=sflag, size = 0x4, scoped, tag = 'scoped memory for tpu_custom_call.1']
    #allocation5 [shape = 'u8[4096]{0}', space=vmem, size = 0x1000, scoped, tag = 'output window, operand 0, single buffered']
    %7 = vsyncpa [#allocation3], 0
    %8 = vsyncpa [#allocation4], 0
    // Predicated region
    $region2: #{tpu_custom_call.1} parent=1 // pred_check
      _
    $region3: #{tpu_custom_call.1} parent=1 // pred_check_branch
      %10 = sbr.rel (0) target = $region5
    $region4: #{tpu_custom_call.1} parent=1 // pred_region
      _
    $region5: #{tpu_custom_call.1} parent=1 // pred_fallthru
      _
    // Predicated region
    $region6: #{tpu_custom_call.1} parent=1 // pred_check
      _
    $region7: #{tpu_custom_call.1} parent=1 // pred_check_branch
      %12 = sbr.rel (0) target = $region9
    $region8: #{tpu_custom_call.1} parent=1 // pred_region
      %s14 = ssub.s32 3584, 3584
      %15 = vsyncadd [#allocation3], %s14
      %s16 = sshll.u32 [#allocation2], 4
      %s17 = int_to_ptr.vmem [resolvable:$true] %s16
      %22 = dma.hbm_to_vmem [thread:$0]  %s1, 3584, %s17, [#allocation3], 128, 128, 8
    $region9: #{tpu_custom_call.1} parent=1 // pred_fallthru
      _
    // Predicated region
    $region10: #{tpu_custom_call.1} parent=1 // pred_check
      _
    $region11: #{tpu_custom_call.1} parent=1 // pred_check_branch
      %24 = sbr.rel (0) target = $region13
    $region12: #{tpu_custom_call.1} parent=1 // pred_region
      %25 = dma.done [#allocation3], 3584
    $region13: #{tpu_custom_call.1} parent=1 // pred_fallthru
      _
    %v26 = vld [vmem:[%s0] sm:$0xff]
    %vm27 = vcmp.ge.s32.totalorder %v26, 0
    %vm28 = vcmp.lt.s32.totalorder %v26, 56
    %vm29 = vmand %vm27, %vm28
    %v30 = vlaneseq
    %v31 = vand.u32 %v30, 127
    %v32 = vmul.u32 %v31, 56
    %v33 = vadd.s32 %v26, %v32
    %v34 = vsel %vm29, %v33, 224
    %v35 = vadd.s32 %v31, 128
    %36 = vset.pattern.permute.xlu0 0
    %37 = vperm.xlu0 %36, %v34
    %v38 = vpop.permute.xlu0 %37
    %vm39 = vcmp.eq.s32.totalorder %v31, %v38
    %vm40 = vcmp.eq.s32.totalorder %v35, %v38
    %41 = vset.pattern.permute.xlu0 1
    %42 = vperm.xlu0 %41, %v34
    %v43 = vpop.permute.xlu0 %42
    %vm44 = vcmp.eq.s32.totalorder %v31, %v43
    %vm45 = vcmp.eq.s32.totalorder %v35, %v43
    %vm46 = vmor %vm39, %vm44
    %vm47 = vmor %vm40, %vm45
    %48 = vset.pattern.permute.xlu0 2
    %49 = vperm.xlu0 %48, %v34
    %v50 = vpop.permute.xlu0 %49
    %vm51 = vcmp.eq.s32.totalorder %v31, %v50
    %vm52 = vcmp.eq.s32.totalorder %v35, %v50
    %vm53 = vmor %vm46, %vm51
    %vm54 = vmor %vm47, %vm52
    %55 = vset.pattern.permute.xlu0 3
    %56 = vperm.xlu0 %55, %v34
    %v57 = vpop.permute.xlu0 %56
    %vm58 = vcmp.eq.s32.totalorder %v31, %v57
    %vm59 = vcmp.eq.s32.totalorder %v35, %v57
    %vm60 = vmor %vm53, %vm58
    %vm61 = vmor %vm54, %vm59
    %v62 = vsel %vm60, 1, 0
    %v63 = vsel %vm61, 1, 0
    %v64 = vcvt.s32.f32 %v62
    %v65 = vcvt.s32.f32 %v63
    %v66 = vld [vmem:[#allocation2] sm:$0xff]
    %v67 = vld [vmem:[#allocation2 + $0x8] sm:$0xff]
    %v68 = vld [vmem:[#allocation2 + $0x10] sm:$0xff]
    %v69 = vld [vmem:[#allocation2 + $0x18] sm:$0xff]
    %v70 = vld [vmem:[#allocation2 + $0x20] sm:$0xff]
    %v71 = vld [vmem:[#allocation2 + $0x28] sm:$0xff]
    %v72 = vld [vmem:[#allocation2 + $0x30] sm:$0xff]
    %v73 = vld [vmem:[#allocation2 + $0x38] sm:$0xff]
    %v74 = vld [vmem:[#allocation2 + $0x40] sm:$0xff]
    %v75 = vld [vmem:[#allocation2 + $0x48] sm:$0xff]
    %v76 = vld [vmem:[#allocation2 + $0x50] sm:$0xff]
    %v77 = vld [vmem:[#allocation2 + $0x58] sm:$0xff]
    %v78 = vld [vmem:[#allocation2 + $0x60] sm:$0xff]
    %v79 = vld [vmem:[#allocation2 + $0x68] sm:$0xff]
    %v80 = vld [vmem:[#allocation2 + $0x70] sm:$0xff]
    %v81 = vld [vmem:[#allocation2 + $0x78] sm:$0xff]
    %v82 = vld [vmem:[#allocation2 + $0x80] sm:$0xff]
    %v83 = vld [vmem:[#allocation2 + $0x88] sm:$0xff]
    %v84 = vld [vmem:[#allocation2 + $0x90] sm:$0xff]
    %v85 = vld [vmem:[#allocation2 + $0x98] sm:$0xff]
    %v86 = vld [vmem:[#allocation2 + $0xa0] sm:$0xff]
    %v87 = vld [vmem:[#allocation2 + $0xa8] sm:$0xff]
    %v88 = vld [vmem:[#allocation2 + $0xb0] sm:$0xff]
    %v89 = vld [vmem:[#allocation2 + $0xb8] sm:$0xff]
    %v90 = vld [vmem:[#allocation2 + $0xc0] sm:$0xff]
    %v91 = vld [vmem:[#allocation2 + $0xc8] sm:$0xff]
    %v92 = vld [vmem:[#allocation2 + $0xd0] sm:$0xff]
    %v93 = vld [vmem:[#allocation2 + $0xd8] sm:$0xff]
    %vm94 = vcmask 785408
    %v96 = vsel %vm94, %v65, 0
    %98 = vmatprep.subr.mxu0 0.0
    %99 = vmatpush1.msra.mxu0 %v81
    %100 = vmatprep.subr.mxu0 0.0
    %101 = vmatpush1.msra.mxu0 %v80
    %102 = vmatprep.subr.mxu0 0.0
    %103 = vmatpush1.msra.mxu0 %v79
    %104 = vmatprep.subr.mxu0 0.0
    %105 = vmatpush1.msra.mxu0 %v78
    %106 = vmatprep.subr.mxu0 0.0
    %107 = vmatpush1.msra.mxu0 %v77
    %108 = vmatprep.subr.mxu0 0.0
    %109 = vmatpush1.msra.mxu0 %v76
    %110 = vmatprep.subr.mxu0 0.0
    %111 = vmatpush1.msra.mxu0 %v75
    %112 = vmatprep.subr.mxu0 0.0
    %113 = vmatpush1.msra.mxu0 %v74
    %114 = vmatprep.subr.mxu0 0.0
    %115 = vmatpush1.msra.mxu0 %v73
    %116 = vmatprep.subr.mxu0 0.0
    %117 = vmatpush1.msra.mxu0 %v72
    %118 = vmatprep.subr.mxu0 0.0
    %119 = vmatpush1.msra.mxu0 %v71
    %120 = vmatprep.subr.mxu0 0.0
    %121 = vmatpush1.msra.mxu0 %v70
    %122 = vmatprep.subr.mxu0 0.0
    %123 = vmatpush1.msra.mxu0 %v69
    %124 = vmatprep.subr.mxu0 0.0
    %125 = vmatpush1.msra.mxu0 %v68
    %126 = vmatprep.subr.mxu0 0.0
    %127 = vmatpush1.msra.mxu0 %v67
    %128 = vmatprep.subr.mxu0 0.0
    %129 = vmatpush1.msra.mxu0 %v66
    %130 = vmatprep.subr.mxu0 0.0
    %131 = vmatpush2.msra.mxu0 0.0
    %132 = vmatprep.subr.mxu0 0.0
    %133 = vmatpush2.msra.mxu0 0.0
    %134 = vmatprep.subr.mxu0 0.0
    %135 = vmatpush2.msra.mxu0 0.0
    %136 = vmatprep.subr.mxu0 0.0
    %137 = vmatpush2.msra.mxu0 0.0
    %138 = vmatprep.subr.mxu0 0.0
    %139 = vmatpush2.msra.mxu0 %v93
    %140 = vmatprep.subr.mxu0 0.0
    %141 = vmatpush2.msra.mxu0 %v92
    %142 = vmatprep.subr.mxu0 0.0
    %143 = vmatpush2.msra.mxu0 %v91
    %144 = vmatprep.subr.mxu0 0.0
    %145 = vmatpush2.msra.mxu0 %v90
    %146 = vmatprep.subr.mxu0 0.0
    %147 = vmatpush2.msra.mxu0 %v89
    %148 = vmatprep.subr.mxu0 0.0
    %149 = vmatpush2.msra.mxu0 %v88
    %150 = vmatprep.subr.mxu0 0.0
    %151 = vmatpush2.msra.mxu0 %v87
    %152 = vmatprep.subr.mxu0 0.0
    %153 = vmatpush2.msra.mxu0 %v86
    %154 = vmatprep.subr.mxu0 0.0
    %155 = vmatpush2.msra.mxu0 %v85
    %156 = vmatprep.subr.mxu0 0.0
    %157 = vmatpush2.msra.mxu0 %v84
    %158 = vmatprep.subr.mxu0 0.0
    %159 = vmatpush2.msra.mxu0 %v83
    %160 = vmatprep.subr.mxu0 0.0
    %161 = vmatpush2.msra.mxu0 %v82
    %162 = vmatprep.mubr.f32.mxu0 %v96
    %163 = vmatmul.mubr.f32.gmra.mxu0 %v64
    %v164 = vpop.f32.mrf.mxu0
    %v165 = vadd.f32 0.0, %v164
    %v166 = vpop.f32.mrf.mxu0
    %167 = vdwg.mxu0
    %168 = vst [vmem:[#allocation5] sm:$0xff] %v165
    // Predicated region
    $region14: #{tpu_custom_call.1} parent=1 // pred_check
      _
    $region15: #{tpu_custom_call.1} parent=1 // pred_check_branch
      %170 = sbr.rel (0) target = $region17
    $region16: #{tpu_custom_call.1} parent=1 // pred_region
      %s172 = ssub.s32 128, 128
      %173 = vsyncadd [#allocation4], %s172
      %s175 = sshll.u32 [#allocation5], 4
      %s176 = int_to_ptr.vmem [resolvable:$true] %s175
      %178 = dma.vmem_to_hbm [thread:$0]  %s176, 128, %s2, [#allocation4]
    $region17: #{tpu_custom_call.1} parent=1 // pred_fallthru
      _
    // Predicated region
    $region18: #{tpu_custom_call.1} parent=1 // pred_check
      _
    $region19: #{tpu_custom_call.1} parent=1 // pred_check_branch
      %180 = sbr.rel (0) target = $region21
    $region20: #{tpu_custom_call.1} parent=1 // pred_region
      %181 = dma.done [#allocation4], 128
    $region21: #{tpu_custom_call.1} parent=1 // pred_fallthru
      _
    %182 = vsyncpa [#allocation3], 1
    %183 = vsyncpa [#allocation4], 1

</llo_original>
